<compile_context>
chip_gen: v5e
topology: v5e:2x2
jax: 0.10.0
libtpu: 0.0.40
codegen_flags: <defaults>
</compile_context>

<pallas_src>
import functools

import jax
import jax.numpy as jnp
from jax.experimental import pallas as pl
from jax.experimental.pallas import tpu as pltpu


def _crop_split_gt_kernel(bounds_ref, data_ref, out_ref, *, tile_h):
    # bounds_ref: (2, tile_wn) f32 — row 0 = lo (y1 or +inf), row 1 = hi (y2 or -inf).
    # data_ref / out_ref: (tile_h, tile_wn) lane-dense tiles.
    i = pl.program_id(1)  # row-tile index (fast grid axis)
    th = out_ref.shape[0]

    # Row coordinates of this tile: (th, 1); broadcast against lane vectors
    # instead of materializing a full-tile iota.
    ph = (jax.lax.broadcasted_iota(jnp.int32, (th, 1), 0)
          + i * tile_h).astype(jnp.float32)

    lo = bounds_ref[0:1, :]   # (1, tile_wn)
    hi = bounds_ref[1:2, :]   # (1, tile_wn)

    inside = (ph >= lo) & (ph <= hi)          # (th, tile_wn), compare in f32
    d = data_ref[...]
    out_ref[...] = jnp.where(inside, d, jnp.zeros_like(d))


def _vmem_capacity_bytes(default=64 << 20):
    """Trace-time VMEM capacity; conservative (v7x-safe) fallback."""
    try:
        info = pltpu.get_tpu_info()
        cap = getattr(info, "vmem_capacity_bytes", None)
        if cap:
            return int(cap)
    except Exception:
        pass
    return default


def _round_down(x, m):
    return (x // m) * m


def _choose_tiles(H, WN_pad, itemsize, vmem_cap_bytes):
    """Pick (tile_h, tile_wn, vmem_limit) with generation-aware block bytes."""
    # Sublane packing: 8 rows for f32, 16 for bf16, 32 for int8/fp8.
    sublane = max(8, 32 // max(1, itemsize))

    if vmem_cap_bytes >= (100 << 20):
        # v5e / v6e: 128 MiB VMEM — big blocks hit ~85% of HBM roofline.
        target_block_bytes = 12 << 20
        vmem_limit = 96 << 20
    else:
        # v7x: 64 MiB VMEM per TC — keep 2x data + 2x out buffers well inside.
        target_block_bytes = 4 << 20
        vmem_limit = 40 << 20

    # Lane tile: multiple of 128, bounded so even a minimum-height (sublane)
    # tile stays under the target block size.
    max_tile_wn = max(128, _round_down(target_block_bytes // (sublane * itemsize), 128))
    tile_wn = min(WN_pad, max_tile_wn)

    # Row tile: largest sublane-aligned height under the target block bytes.
    tile_h = _round_down(target_block_bytes // (tile_wn * itemsize), sublane)
    tile_h = max(sublane, tile_h)
    if tile_h >= H:
        tile_h = H  # full dim is always a legal block extent
    return tile_h, tile_wn, vmem_limit


def crop_split_gt(data, rois, c=2):
    """Forward pass of crop_split_gt.

    data: (H, W, N) GT masks, channel-last.
    rois: (N, 4) float boxes (x1, y1, x2, y2) in (H, W) pixel coordinates.
    c:    split factor (API parity; does not alter GT values).
    Returns (H, W, N): data inside each ROI, zero outside.
    """
    del c  # TODO(synk): verify the c x c split never changes GT values/shape.
    H, W, N = data.shape
    assert rois.shape == (N, 4)
    WN = W * N

    # Lane-dense layout: flatten (W, N) -> W*N (row-major view, free).
    data_flat = data.reshape(H, WN)

    # Fold the grid-invariant x-inside mask into per-lane y bounds:
    #   lo = y1 where x inside else +inf, hi = y2 where x inside else -inf.
    rois_f = jnp.asarray(rois, jnp.float32)
    x1, y1, x2, y2 = rois_f[:, 0], rois_f[:, 1], rois_f[:, 2], rois_f[:, 3]
    pw = jnp.arange(W, dtype=jnp.float32)[:, None]                 # (W, 1)
    x_in = (pw >= x1[None, :]) & (pw <= x2[None, :])               # (W, N)
    lo = jnp.where(x_in, jnp.broadcast_to(y1[None, :], (W, N)), jnp.inf).reshape(WN)
    hi = jnp.where(x_in, jnp.broadcast_to(y2[None, :], (W, N)), -jnp.inf).reshape(WN)

    # Pad lanes to a multiple of 128 so stores are unmasked full-lane vst.
    WN_pad = ((WN + 127) // 128) * 128
    pad = WN_pad - WN
    if pad:
        data_flat = jnp.pad(data_flat, ((0, 0), (0, pad)))
        lo = jnp.pad(lo, (0, pad), constant_values=jnp.inf)
        hi = jnp.pad(hi, (0, pad), constant_values=-jnp.inf)
    bounds = jnp.stack([lo, hi], axis=0)                           # (2, WN_pad)

    itemsize = jnp.dtype(data.dtype).itemsize
    tile_h, tile_wn, vmem_limit = _choose_tiles(
        H, WN_pad, itemsize, _vmem_capacity_bytes())

    # Lane tiles on the slow axis (bounds block only changes per lane tile),
    # row tiles on the fast axis.
    grid = (pl.cdiv(WN_pad, tile_wn), pl.cdiv(H, tile_h))

    kernel = functools.partial(_crop_split_gt_kernel, tile_h=tile_h)
    out_flat = pl.pallas_call(
        kernel,
        out_shape=jax.ShapeDtypeStruct((H, WN_pad), data.dtype),
        grid=grid,
        in_specs=[
            pl.BlockSpec((2, tile_wn), lambda j, i: (0, j)),        # bounds
            pl.BlockSpec((tile_h, tile_wn), lambda j, i: (i, j)),   # data
        ],
        out_specs=pl.BlockSpec((tile_h, tile_wn), lambda j, i: (i, j)),
        compiler_params=pltpu.CompilerParams(
            dimension_semantics=("parallel", "parallel"),
            vmem_limit_bytes=vmem_limit,
        ),
    )(bounds, data_flat)

    if pad:
        out_flat = out_flat[:, :WN]
    return out_flat.reshape(H, W, N)


class CropSplitGt:
    """JAX/Pallas counterpart of the PyTorch CropSplitGt nn.Module."""

    def __init__(self, c=2):
        self.c = c

    def __call__(self, data, rois):
        return crop_split_gt(data, rois, self.c)


if __name__ == "__main__":
    key = jax.random.PRNGKey(0)
    H, W, N = 16, 16, 8  # small spatial grid, 8 ROIs / GT masks (W*N = 128 lanes)

    k_data, k_x1, k_y1, k_wd, k_ht = jax.random.split(key, 5)
    # Binary-ish GT masks, channel-last (H, W, N).
    data = (jax.random.uniform(k_data, (H, W, N)) > 0.5).astype(jnp.float32)

    # Deterministic random boxes with x1 < x2, y1 < y2 inside the grid.
    x1 = jax.random.uniform(k_x1, (N,), minval=0.0, maxval=W / 2 - 1.0)
    y1 = jax.random.uniform(k_y1, (N,), minval=0.0, maxval=H / 2 - 1.0)
    x2 = jnp.minimum(x1 + jax.random.uniform(k_wd, (N,), minval=2.0, maxval=W / 2), W - 1.0)
    y2 = jnp.minimum(y1 + jax.random.uniform(k_ht, (N,), minval=2.0, maxval=H / 2), H - 1.0)
    rois = jnp.stack([x1, y1, x2, y2], axis=1)  # (N, 4)

    module = CropSplitGt(c=2)
    out = jax.block_until_ready(module(data, rois))

    # Pure-JAX reference for correctness.
    ph = jnp.arange(H, dtype=jnp.float32)[:, None, None]
    pw = jnp.arange(W, dtype=jnp.float32)[None, :, None]
    inside = ((pw >= rois[:, 0]) & (pw <= rois[:, 2]) &
              (ph >= rois[:, 1]) & (ph <= rois[:, 3]))
    ref = jnp.where(inside, data, 0.0)

    assert out.shape == (H, W, N) and out.dtype == data.dtype
    assert jnp.allclose(out, ref), "Pallas kernel does not match reference"
    print("KERNEL_OK")
</pallas_src>

<mosaic_0001>
module attributes {stable_mosaic.version = 11 : i64} {
  func.func @_crop_split_gt_kernel(%arg0: i32, %arg1: i32, %arg2: memref<2x128xf32, #tpu.memory_space<vmem>>, %arg3: memref<16x128xf32, #tpu.memory_space<vmem>>, %arg4: memref<16x128xf32, #tpu.memory_space<vmem>>) attributes {dimension_semantics = [#tpu.dimension_semantics<parallel>, #tpu.dimension_semantics<parallel>], iteration_bounds = array<i64: 1, 1>, scalar_prefetch = 0 : i64, scratch_operands = 0 : i64, tpu.core_type = #tpu.core_type<tc>, window_params = [{transform_indices = @transform_0, window_bounds = array<i64: 2, 128>}, {transform_indices = @transform_1, window_bounds = array<i64: 16, 128>}, {transform_indices = @transform_2, window_bounds = array<i64: 16, 128>}]} {
    %0 = tpu.iota {dimensions = array<i32: 0>} : vector<16x1xi32>
    %c16_i32 = arith.constant 16 : i32
    %1 = arith.muli %arg1, %c16_i32 : i32
    %2 = vector.broadcast %1 : i32 to vector<16x1xi32>
    %3 = arith.addi %0, %2 : vector<16x1xi32>
    %4 = arith.sitofp %3 : vector<16x1xi32> to vector<16x1xf32>
    %c0 = arith.constant 0 : index
    %c0_0 = arith.constant 0 : index
    %5 = vector.load %arg2[%c0, %c0_0] : memref<2x128xf32, #tpu.memory_space<vmem>>, vector<1x128xf32>
    %c1 = arith.constant 1 : index
    %c0_1 = arith.constant 0 : index
    %6 = vector.load %arg2[%c1, %c0_1] : memref<2x128xf32, #tpu.memory_space<vmem>>, vector<1x128xf32>
    %7 = vector.broadcast %4 : vector<16x1xf32> to vector<16x128xf32>
    %8 = vector.broadcast %5 : vector<1x128xf32> to vector<16x128xf32>
    %9 = arith.cmpf oge, %7, %8 : vector<16x128xf32>
    %10 = vector.broadcast %4 : vector<16x1xf32> to vector<16x128xf32>
    %11 = vector.broadcast %6 : vector<1x128xf32> to vector<16x128xf32>
    %12 = arith.cmpf ole, %10, %11 : vector<16x128xf32>
    %13 = arith.andi %9, %12 : vector<16x128xi1>
    %c0_2 = arith.constant 0 : index
    %c0_3 = arith.constant 0 : index
    %14 = vector.load %arg3[%c0_2, %c0_3] : memref<16x128xf32, #tpu.memory_space<vmem>>, vector<16x128xf32>
    %cst = arith.constant 0.000000e+00 : f32
    %15 = vector.broadcast %cst : f32 to vector<16x128xf32>
    %16 = arith.select %13, %14, %15 : vector<16x128xi1>, vector<16x128xf32>
    %c0_4 = arith.constant 0 : index
    %c0_5 = arith.constant 0 : index
    %17 = vector.load %arg4[%c0_4, %c0_5] : memref<16x128xf32, #tpu.memory_space<vmem>>, vector<16x128xf32>
    tpu.vector_store %arg4[%c0_4, %c0_5], %16 {strides = array<i32>} : memref<16x128xf32, #tpu.memory_space<vmem>>, vector<16x128xf32>,
    return
  }
  func.func @transform_0(%arg0: i32, %arg1: i32) -> (i32, i32) {
    %c0_i32 = arith.constant 0 : i32
    %c0_i32_0 = arith.constant 0 : i32
    return %c0_i32, %arg0 : i32, i32
  }
  func.func @transform_1(%arg0: i32, %arg1: i32) -> (i32, i32) {
    %c0_i32 = arith.constant 0 : i32
    return %arg1, %arg0 : i32, i32
  }
  func.func @transform_2(%arg0: i32, %arg1: i32) -> (i32, i32) {
    %c0_i32 = arith.constant 0 : i32
    return %arg1, %arg0 : i32, i32
  }
}

</mosaic_0001>

<llo_original>
// kernel: tpu_custom_call.1
$region0: #{tpu_custom_call.1}
  #allocation0 [shape = 'u32[]', space=smem, size = 0x4, offset = 0x4, fixed_abs, tag = 'smem constant byte address 0x4 - core index']
  #allocation1 [shape = 'u32[72,128]{1,0:T(1,128)}', space=vmem, size = 0x9000, scoped, tag = 'internal scratch']
  %s0 = inlined_call_operand.hbm [shape: f32[2,128], index: 0, kind: input, shape index: {}]
  %s1 = inlined_call_operand.hbm [shape: f32[16,128], index: 1, kind: input, shape index: {}]
  %s2 = inlined_call_operand.hbm [shape: f32[16,128], index: 2, kind: output, shape index: {}]
  %s3 = sld [smem:[#allocation0]]
  $region26: #{tpu_custom_call.1} parent=0
    _
  %s5 = ssub.s32 1, %s3
  %s6 = scalar_select 0, %s5, %s3
  $region1: #{tpu_custom_call.1} parent=0
    #allocation2 [shape = 'u8[1024]{0}', space=vmem, size = 0x400, scoped, tag = 'input window, operand 0, single buffered']
    #allocation3 [shape = 's32[1]{0}', space=sflag, size = 0x4, scoped, tag = 'scoped memory for tpu_custom_call.1']
    #allocation4 [shape = 's32[1]{0}', space=sflag, size = 0x4, scoped, tag = 'scoped memory for tpu_custom_call.1']
    #allocation5 [shape = 'u8[8192]{0}', space=vmem, size = 0x2000, scoped, tag = 'input window, operand 1, single buffered']
    #allocation6 [shape = 's32[1]{0}', space=sflag, size = 0x4, scoped, tag = 'scoped memory for tpu_custom_call.1']
    #allocation7 [shape = 'u8[8192]{0}', space=vmem, size = 0x2000, scoped, tag = 'output window, operand 0, single buffered']
    %7 = vsyncpa [#allocation3], 0
    %8 = vsyncpa [#allocation6], 0
    %9 = vsyncpa [#allocation4], 0
    // Predicated region
    $region2: #{tpu_custom_call.1} parent=1 // pred_check
      _
    $region3: #{tpu_custom_call.1} parent=1 // pred_check_branch
      %11 = sbr.rel (0) target = $region5
    $region4: #{tpu_custom_call.1} parent=1 // pred_region
      %13 = vsyncadd [#allocation3], 0
      %s15 = sshll.u32 %s0, 4
      %s16 = int_to_ptr.hbm [resolvable:$true] %s15
      %s17 = sshll.u32 [#allocation2], 4
      %s18 = int_to_ptr.vmem [resolvable:$true] %s17
      %20 = dma.hbm_to_vmem [thread:$0]  %s16, 32, %s18, [#allocation3]
    $region5: #{tpu_custom_call.1} parent=1 // pred_fallthru
      _
    // Predicated region
    $region6: #{tpu_custom_call.1} parent=1 // pred_check
      _
    $region7: #{tpu_custom_call.1} parent=1 // pred_check_branch
      %22 = sbr.rel (0) target = $region9
    $region8: #{tpu_custom_call.1} parent=1 // pred_region
      %24 = vsyncadd [#allocation6], 0
      %s25 = sshll.u32 %s1, 4
      %s26 = int_to_ptr.hbm [resolvable:$true] %s25
      %s27 = sshll.u32 [#allocation5], 4
      %s28 = int_to_ptr.vmem [resolvable:$true] %s27
      %33 = dma.hbm_to_vmem [thread:$0]  %s26, 256, %s28, [#allocation6], 128, 128, 8
    $region9: #{tpu_custom_call.1} parent=1 // pred_fallthru
      _
    // Predicated region
    $region10: #{tpu_custom_call.1} parent=1 // pred_check
      _
    $region11: #{tpu_custom_call.1} parent=1 // pred_check_branch
      %35 = sbr.rel (0) target = $region13
    $region12: #{tpu_custom_call.1} parent=1 // pred_region
      %37 = dma.done [#allocation3], 32
    $region13: #{tpu_custom_call.1} parent=1 // pred_fallthru
      _
    // Predicated region
    $region14: #{tpu_custom_call.1} parent=1 // pred_check
      _
    $region15: #{tpu_custom_call.1} parent=1 // pred_check_branch
      %39 = sbr.rel (0) target = $region17
    $region16: #{tpu_custom_call.1} parent=1 // pred_region
      %41 = dma.done [#allocation6], 256
    $region17: #{tpu_custom_call.1} parent=1 // pred_fallthru
      _
    %v42 = vlaneseq
    %v43 = vshrl.u32 %v42, 7
    %v44 = vadd.s32 %v43, 8
    %s45 = smul.u32 0, 16
    %v46 = vstv %s45
    %v47 = vadd.s32 %v43, %v46
    %v48 = vadd.s32 %v44, %v46
    %v49 = vcvt.s32.f32 %v47
    %v50 = vcvt.s32.f32 %v48
    %v51 = vld [vmem:[#allocation2] sm:$0x1]
    %v52 = vld [vmem:[#allocation2 + $0x1] sm:$0x1]
    %v53 = vperm.slane %v51, 0
    %vm54 = vcmp.ge.f32.partialorder %v49, %v53
    %vm55 = vcmp.ge.f32.partialorder %v50, %v53
    %v56 = vperm.slane %v52, 0
    %vm57 = vcmp.le.f32.partialorder %v49, %v56
    %vm58 = vcmp.le.f32.partialorder %v50, %v56
    %vm59 = vmand %vm54, %vm57
    %vm60 = vmand %vm55, %vm58
    %v61 = vld [vmem:[#allocation5] sm:$0xff]
    %v62 = vld [vmem:[#allocation5 + $0x8] sm:$0xff]
    %v63 = vsel %vm59, %v61, 0.0
    %v64 = vsel %vm60, %v62, 0.0
    %65 = vst [vmem:[#allocation7] sm:$0xff] %v63
    %66 = vst [vmem:[#allocation7 + $0x8] sm:$0xff] %v64
    // Predicated region
    $region18: #{tpu_custom_call.1} parent=1 // pred_check
      _
    $region19: #{tpu_custom_call.1} parent=1 // pred_check_branch
      %68 = sbr.rel (0) target = $region21
    $region20: #{tpu_custom_call.1} parent=1 // pred_region
      %70 = vsyncadd [#allocation4], 0
      %s71 = sshll.u32 [#allocation7], 4
      %s72 = int_to_ptr.vmem [resolvable:$true] %s71
      %s73 = sshll.u32 %s2, 4
      %s74 = int_to_ptr.hbm [resolvable:$true] %s73
      %79 = dma.vmem_to_hbm [thread:$0]  %s72, 256, %s74, [#allocation4], 128, 128, 8
    $region21: #{tpu_custom_call.1} parent=1 // pred_fallthru
      _
    // Predicated region
    $region22: #{tpu_custom_call.1} parent=1 // pred_check
      _
    $region23: #{tpu_custom_call.1} parent=1 // pred_check_branch
      %81 = sbr.rel (0) target = $region25
    $region24: #{tpu_custom_call.1} parent=1 // pred_region
      %83 = dma.done [#allocation4], 256
    $region25: #{tpu_custom_call.1} parent=1 // pred_fallthru
      _
    %84 = vsyncpa [#allocation3], 1
    %85 = vsyncpa [#allocation6], 1
    %86 = vsyncpa [#allocation4], 1

</llo_original>
